<compile_context>
chip_gen: v6e
topology: v6e:2x2x1
jax: 0.10.0
libtpu: 0.0.40
codegen_flags: <defaults>
</compile_context>

<pallas_src>
import functools

import jax
import jax.numpy as jnp
from jax.experimental import pallas as pl
from jax.experimental.pallas import tpu as pltpu


def _round_up(x, m):
    return ((x + m - 1) // m) * m


# ----------------------------------------------------------------------------
# Fused kernel: 4-tap space-to-depth conv (MXU) + bias + LeakyReLU(0.2)
# ----------------------------------------------------------------------------
def _conv_bn_lrelu_kernel(x_ref, w_ref, b_ref, o_ref):
    # x_ref: (Hout+1, Wout+1, C4) bf16  -- space-to-depth input incl. +1 halo
    # w_ref: (4, C4, Cp)          bf16  -- per-tap weights, BN scale folded in
    # b_ref: (1, Cp)              f32   -- conv bias + BN shift (folded)
    # o_ref: (Hout, Wout, Cp)     bf16
    Hout, Wout, Cp = o_ref.shape
    C4 = x_ref.shape[-1]

    x = x_ref[...]
    acc = jnp.zeros((Hout * Wout, Cp), jnp.float32)
    # Four taps of the 2x2 stride-1 conv over the space-to-depth image;
    # accumulate on the MXU in f32.
    for s, (ri, rj) in enumerate(((0, 0), (0, 1), (1, 0), (1, 1))):
        a = x[ri:ri + Hout, rj:rj + Wout, :].reshape(Hout * Wout, C4)
        acc = acc + jnp.dot(a, w_ref[s], preferred_element_type=jnp.float32)

    y = acc + b_ref[...]               # fused conv-bias + BatchNorm affine
    y = jnp.maximum(y, 0.2 * y)        # LeakyReLU(0.2)
    o_ref[...] = y.reshape(Hout, Wout, Cp).astype(o_ref.dtype)


# ----------------------------------------------------------------------------
# NHWC-native forward (the chainable fast path: no layout transposes)
# ----------------------------------------------------------------------------
def convblock_forward_nhwc(params, x_nhwc, *, stride=2, pad=1, eps=1e-5,
                           out_dtype=jnp.bfloat16):
    assert stride == 2 and pad == 1, "specialized to the module's k=4,s=2,p=1"
    w_hwio = params["w"]                     # [4, 4, Cin, Cout]
    conv_b = params["b"]                     # [Cout]
    gamma, beta, mean, var = params["bn"]    # each [Cout]

    kh, kw, Cin, Cout = w_hwio.shape
    assert (kh, kw) == (4, 4)
    N, H, W, Cx = x_nhwc.shape
    assert Cx == Cin

    Hout = (H + 2 * pad - kh) // stride + 1
    Wout = (W + 2 * pad - kw) // stride + 1
    Hs, Ws = Hout + 1, Wout + 1              # space-to-depth grid incl. halo

    cin_p = _round_up(Cin, 8)                # sublane-aligned channel pad
    C4 = 4 * cin_p                           # per-tap K (lane axis of xs)
    Cp = _round_up(Cout, 128)                # lane-dense output channels

    # ---- space-to-depth: one pad + reshape + transpose pass (no im2col) ----
    ph = 2 * Hs - H                          # total vertical pad (top=1)
    pw = 2 * Ws - W
    xp = jnp.pad(x_nhwc.astype(jnp.bfloat16),
                 ((0, 0), (1, ph - 1), (1, pw - 1), (0, cin_p - Cin)))
    xs = (xp.reshape(N, Hs, 2, Ws, 2, cin_p)
            .transpose(0, 1, 3, 2, 4, 5)
            .reshape(N, Hs, Ws, C4))         # channel layout: (di*2+dj)*cin_p + c

    # ---- weights: 4 tap matrices, BN scale folded in, bf16 ----
    scale = gamma / jnp.sqrt(var + eps)                       # [Cout]
    scale_p = jnp.pad(scale, (0, Cp - Cout))                  # [Cp]
    w_p = jnp.pad(w_hwio, ((0, 0), (0, 0), (0, cin_p - Cin), (0, Cp - Cout)))
    wtap = ((w_p * scale_p)                                   # fold BN scale
            .reshape(2, 2, 2, 2, cin_p, Cp)                   # (ri,di,rj,dj,c,o)
            .transpose(0, 2, 1, 3, 4, 5)                      # (ri,rj,di,dj,c,o)
            .reshape(4, C4, Cp)
            .astype(jnp.bfloat16))

    # ---- conv bias + BN shift folded into one f32 bias ----
    bias = beta + (conv_b - mean) * scale
    bias_p = jnp.pad(bias, (0, Cp - Cout)).reshape(1, Cp).astype(jnp.float32)

    # ---- VMEM budget (double-buffered in/out + resident weights + acc) ----
    est = (2 * Hs * Ws * C4 * 2
           + 4 * C4 * Cp * 2
           + 2 * Hout * Wout * Cp * 2
           + Hout * Wout * Cp * 4
           + Cp * 4)
    vmem_limit = min(96 * 1024 * 1024, max(32 * 1024 * 1024, 2 * est))

    out = pl.pallas_call(
        _conv_bn_lrelu_kernel,
        out_shape=jax.ShapeDtypeStruct((N, Hout, Wout, Cp), out_dtype),
        grid=(N,),
        in_specs=[
            pl.BlockSpec((None, Hs, Ws, C4), lambda n: (n, 0, 0, 0)),
            pl.BlockSpec((4, C4, Cp), lambda n: (0, 0, 0)),      # resident
            pl.BlockSpec((1, Cp), lambda n: (0, 0)),              # resident
        ],
        out_specs=pl.BlockSpec((None, Hout, Wout, Cp), lambda n: (n, 0, 0, 0)),
        compiler_params=pltpu.CompilerParams(
            dimension_semantics=("parallel",),   # grid length N (even) -> megacore
            vmem_limit_bytes=vmem_limit,
        ),
    )(xs, wtap, bias_p)

    return out[..., :Cout]                       # NHWC, bf16


# ----------------------------------------------------------------------------
# NCHW module-boundary wrapper (chained blocks should use the NHWC path)
# ----------------------------------------------------------------------------
def convblock_forward(params, x_nchw, **kw):
    y = convblock_forward_nhwc(params, jnp.transpose(x_nchw, (0, 2, 3, 1)), **kw)
    return jnp.transpose(y, (0, 3, 1, 2))        # NHWC -> NCHW


# ----------------------------------------------------------------------------
# Pure-JAX reference (bf16 conv precision, f32 BN) for a sanity check
# ----------------------------------------------------------------------------
def convblock_reference(params, x_nchw, *, stride=2, pad=1, eps=1e-5):
    w_hwio = params["w"].astype(jnp.bfloat16)
    gamma, beta, mean, var = params["bn"]
    x = jnp.transpose(x_nchw, (0, 2, 3, 1)).astype(jnp.bfloat16)
    conv = jax.lax.conv_general_dilated(
        x, w_hwio, window_strides=(stride, stride),
        padding=((pad, pad), (pad, pad)),
        dimension_numbers=("NHWC", "HWIO", "NHWC"),
        preferred_element_type=jnp.float32,
    ) + params["b"]
    y = (conv - mean) / jnp.sqrt(var + eps) * gamma + beta
    y = jnp.where(y >= 0.0, y, 0.2 * y)
    return jnp.transpose(y, (0, 3, 1, 2))


# ----------------------------------------------------------------------------
# Deterministic synthetic parameters
# ----------------------------------------------------------------------------
def init_convblock(key, in_dim, out_dim, k=4):
    k1, k2, k3, k4, k5, k6 = jax.random.split(key, 6)
    fan_in = k * k * in_dim
    w = jax.random.normal(k1, (k, k, in_dim, out_dim), jnp.float32) / jnp.sqrt(
        jnp.float32(fan_in))
    b = 0.01 * jax.random.normal(k2, (out_dim,), jnp.float32)
    gamma = 1.0 + 0.1 * jax.random.normal(k3, (out_dim,), jnp.float32)
    beta = 0.1 * jax.random.normal(k4, (out_dim,), jnp.float32)
    mean = 0.1 * jax.random.normal(k5, (out_dim,), jnp.float32)
    var = 1.0 + 0.1 * jnp.abs(jax.random.normal(k6, (out_dim,), jnp.float32))
    return {"w": w, "b": b, "bn": (gamma, beta, mean, var)}


# ----------------------------------------------------------------------------
if __name__ == "__main__":
    key = jax.random.PRNGKey(0)
    k_params, k_x = jax.random.split(key)

    in_dim, out_dim = 4, 128
    params = init_convblock(k_params, in_dim, out_dim)

    # small NCHW input consistent with the module: [2, 4, 16, 16]
    x = jax.random.normal(k_x, (2, in_dim, 16, 16), jnp.float32)

    fwd = jax.jit(functools.partial(convblock_forward, params))
    out = jax.block_until_ready(fwd(x))

    assert out.shape == (2, out_dim, 8, 8), out.shape
    out_f32 = out.astype(jnp.float32)
    assert bool(jnp.all(jnp.isfinite(out_f32)))

    ref = jax.block_until_ready(convblock_reference(params, x))
    assert bool(jnp.allclose(out_f32, ref, atol=3e-2, rtol=3e-2)), float(
        jnp.max(jnp.abs(out_f32 - ref)))

    print("KERNEL_OK")
</pallas_src>

<mosaic_0001>
module attributes {stable_mosaic.version = 11 : i64} {
  func.func @_conv_bn_lrelu_kernel(%arg0: i32, %arg1: memref<1x9x9x32xbf16, #tpu.memory_space<vmem>>, %arg2: memref<4x32x128xbf16, #tpu.memory_space<vmem>>, %arg3: memref<1x128xf32, #tpu.memory_space<vmem>>, %arg4: memref<1x8x8x128xbf16, #tpu.memory_space<vmem>>) attributes {dimension_semantics = [#tpu.dimension_semantics<parallel>], iteration_bounds = array<i64: 2>, scalar_prefetch = 0 : i64, scratch_operands = 0 : i64, tpu.core_type = #tpu.core_type<tc>, window_params = [{transform_indices = @transform_0, window_bounds = array<i64: 1, 9, 9, 32>}, {pipeline_mode = #tpu.pipeline_mode<synchronous>, transform_indices = @transform_1, window_bounds = array<i64: 4, 32, 128>}, {pipeline_mode = #tpu.pipeline_mode<synchronous>, transform_indices = @transform_2, window_bounds = array<i64: 1, 128>}, {transform_indices = @transform_3, window_bounds = array<i64: 1, 8, 8, 128>}]} {
    %c0 = arith.constant 0 : index
    %c0_0 = arith.constant 0 : index
    %c0_1 = arith.constant 0 : index
    %c0_2 = arith.constant 0 : index
    %0 = vector.load %arg1[%c0, %c0_0, %c0_1, %c0_2] : memref<1x9x9x32xbf16, #tpu.memory_space<vmem>>, vector<1x9x9x32xbf16>
    %1 = vector.shape_cast %0 : vector<1x9x9x32xbf16> to vector<9x9x32xbf16>
    %cst = arith.constant 0.000000e+00 : f32
    %2 = vector.broadcast %cst : f32 to vector<64x128xf32>
    %3 = vector.extract_strided_slice %1 {offsets = [0, 0, 0], sizes = [8, 8, 32], strides = [1, 1, 1]} : vector<9x9x32xbf16> to vector<8x8x32xbf16>
    %4 = vector.shape_cast %3 : vector<8x8x32xbf16> to vector<64x32xbf16>
    %c0_3 = arith.constant 0 : index
    %c0_4 = arith.constant 0 : index
    %c0_5 = arith.constant 0 : index
    %5 = vector.load %arg2[%c0_3, %c0_4, %c0_5] : memref<4x32x128xbf16, #tpu.memory_space<vmem>>, vector<1x32x128xbf16>
    %6 = vector.shape_cast %5 : vector<1x32x128xbf16> to vector<32x128xbf16>
    %cst_6 = arith.constant dense<0.000000e+00> : vector<64x128xf32>
    %7 = tpu.matmul %4, %6, %cst_6 {dimension_numbers = #tpu.dot_dimension_numbers<[1], [0], [0], [1], [0, 0, 1, 1], [], []>} : vector<64x32xbf16>, vector<32x128xbf16>, vector<64x128xf32> -> vector<64x128xf32>
    %8 = arith.addf %2, %7 : vector<64x128xf32>
    %9 = vector.extract_strided_slice %1 {offsets = [0, 1, 0], sizes = [8, 8, 32], strides = [1, 1, 1]} : vector<9x9x32xbf16> to vector<8x8x32xbf16>
    %10 = vector.shape_cast %9 : vector<8x8x32xbf16> to vector<64x32xbf16>
    %c1 = arith.constant 1 : index
    %c0_7 = arith.constant 0 : index
    %c0_8 = arith.constant 0 : index
    %11 = vector.load %arg2[%c1, %c0_7, %c0_8] : memref<4x32x128xbf16, #tpu.memory_space<vmem>>, vector<1x32x128xbf16>
    %12 = vector.shape_cast %11 : vector<1x32x128xbf16> to vector<32x128xbf16>
    %cst_9 = arith.constant dense<0.000000e+00> : vector<64x128xf32>
    %13 = tpu.matmul %10, %12, %cst_9 {dimension_numbers = #tpu.dot_dimension_numbers<[1], [0], [0], [1], [0, 0, 1, 1], [], []>} : vector<64x32xbf16>, vector<32x128xbf16>, vector<64x128xf32> -> vector<64x128xf32>
    %14 = arith.addf %8, %13 : vector<64x128xf32>
    %15 = vector.extract_strided_slice %1 {offsets = [1, 0, 0], sizes = [8, 8, 32], strides = [1, 1, 1]} : vector<9x9x32xbf16> to vector<8x8x32xbf16>
    %16 = vector.shape_cast %15 : vector<8x8x32xbf16> to vector<64x32xbf16>
    %c2 = arith.constant 2 : index
    %c0_10 = arith.constant 0 : index
    %c0_11 = arith.constant 0 : index
    %17 = vector.load %arg2[%c2, %c0_10, %c0_11] : memref<4x32x128xbf16, #tpu.memory_space<vmem>>, vector<1x32x128xbf16>
    %18 = vector.shape_cast %17 : vector<1x32x128xbf16> to vector<32x128xbf16>
    %cst_12 = arith.constant dense<0.000000e+00> : vector<64x128xf32>
    %19 = tpu.matmul %16, %18, %cst_12 {dimension_numbers = #tpu.dot_dimension_numbers<[1], [0], [0], [1], [0, 0, 1, 1], [], []>} : vector<64x32xbf16>, vector<32x128xbf16>, vector<64x128xf32> -> vector<64x128xf32>
    %20 = arith.addf %14, %19 : vector<64x128xf32>
    %21 = vector.extract_strided_slice %1 {offsets = [1, 1, 0], sizes = [8, 8, 32], strides = [1, 1, 1]} : vector<9x9x32xbf16> to vector<8x8x32xbf16>
    %22 = vector.shape_cast %21 : vector<8x8x32xbf16> to vector<64x32xbf16>
    %c3 = arith.constant 3 : index
    %c0_13 = arith.constant 0 : index
    %c0_14 = arith.constant 0 : index
    %23 = vector.load %arg2[%c3, %c0_13, %c0_14] : memref<4x32x128xbf16, #tpu.memory_space<vmem>>, vector<1x32x128xbf16>
    %24 = vector.shape_cast %23 : vector<1x32x128xbf16> to vector<32x128xbf16>
    %cst_15 = arith.constant dense<0.000000e+00> : vector<64x128xf32>
    %25 = tpu.matmul %22, %24, %cst_15 {dimension_numbers = #tpu.dot_dimension_numbers<[1], [0], [0], [1], [0, 0, 1, 1], [], []>} : vector<64x32xbf16>, vector<32x128xbf16>, vector<64x128xf32> -> vector<64x128xf32>
    %26 = arith.addf %20, %25 : vector<64x128xf32>
    %c0_16 = arith.constant 0 : index
    %c0_17 = arith.constant 0 : index
    %27 = vector.load %arg3[%c0_16, %c0_17] : memref<1x128xf32, #tpu.memory_space<vmem>>, vector<1x128xf32>
    %28 = vector.broadcast %27 : vector<1x128xf32> to vector<64x128xf32>
    %29 = arith.addf %26, %28 : vector<64x128xf32>
    %cst_18 = arith.constant 2.000000e-01 : f32
    %30 = vector.broadcast %cst_18 : f32 to vector<64x128xf32>
    %31 = arith.mulf %30, %29 : vector<64x128xf32>
    %32 = arith.maximumf %29, %31 : vector<64x128xf32>
    %33 = vector.shape_cast %32 : vector<64x128xf32> to vector<8x8x128xf32>
    %34 = arith.truncf %33 : vector<8x8x128xf32> to vector<8x8x128xbf16>
    %c0_19 = arith.constant 0 : index
    %c0_20 = arith.constant 0 : index
    %c0_21 = arith.constant 0 : index
    %c0_22 = arith.constant 0 : index
    %35 = vector.load %arg4[%c0_19, %c0_20, %c0_21, %c0_22] : memref<1x8x8x128xbf16, #tpu.memory_space<vmem>>, vector<1x8x8x128xbf16>
    %36 = vector.shape_cast %35 : vector<1x8x8x128xbf16> to vector<8x8x128xbf16>
    %37 = vector.shape_cast %34 : vector<8x8x128xbf16> to vector<1x8x8x128xbf16>
    tpu.vector_store %arg4[%c0_19, %c0_20, %c0_21, %c0_22], %37 {strides = array<i32>} : memref<1x8x8x128xbf16, #tpu.memory_space<vmem>>, vector<1x8x8x128xbf16>,
    return
  }
  func.func @transform_0(%arg0: i32) -> (i32, i32, i32, i32) {
    %c0_i32 = arith.constant 0 : i32
    %c0_i32_0 = arith.constant 0 : i32
    %c0_i32_1 = arith.constant 0 : i32
    %c0_i32_2 = arith.constant 0 : i32
    return %arg0, %c0_i32, %c0_i32_0, %c0_i32_1 : i32, i32, i32, i32
  }
  func.func @transform_1(%arg0: i32) -> (i32, i32, i32) {
    %c0_i32 = arith.constant 0 : i32
    %c0_i32_0 = arith.constant 0 : i32
    %c0_i32_1 = arith.constant 0 : i32
    %c0_i32_2 = arith.constant 0 : i32
    return %c0_i32, %c0_i32_0, %c0_i32_1 : i32, i32, i32
  }
  func.func @transform_2(%arg0: i32) -> (i32, i32) {
    %c0_i32 = arith.constant 0 : i32
    %c0_i32_0 = arith.constant 0 : i32
    %c0_i32_1 = arith.constant 0 : i32
    return %c0_i32, %c0_i32_0 : i32, i32
  }
  func.func @transform_3(%arg0: i32) -> (i32, i32, i32, i32) {
    %c0_i32 = arith.constant 0 : i32
    %c0_i32_0 = arith.constant 0 : i32
    %c0_i32_1 = arith.constant 0 : i32
    %c0_i32_2 = arith.constant 0 : i32
    return %arg0, %c0_i32, %c0_i32_0, %c0_i32_1 : i32, i32, i32, i32
  }
}

</mosaic_0001>

<llo_original>
// kernel: convblock_forward.1
$region0: #{convblock_forward.1}
  #allocation0 [shape = 'u32[]', space=smem, size = 0x4, offset = 0x4, fixed_abs, tag = 'smem constant byte address 0x4 - core index']
  #allocation1 [shape = 'u32[144,128]{1,0:T(1,128)}', space=vmem, size = 0x12000, scoped, tag = 'internal scratch']
  %s0 = inlined_call_operand.vmem [shape: bf16[2,9,9,32], index: 0, kind: input, shape index: {}]
  %s1 = inlined_call_operand.vmem [shape: bf16[4,32,128], index: 1, kind: input, shape index: {}]
  %s2 = inlined_call_operand.vmem [shape: f32[1,128], index: 2, kind: input, shape index: {}]
  %s3 = inlined_call_operand.hbm [shape: bf16[2,8,8,128], index: 3, kind: output, shape index: {}]
  %s4 = sld [smem:[#allocation0]]
  $region45: #{convblock_forward.1} parent=0
    _
  %s6 = ssub.s32 1, %s4
  %s7 = scalar_select 0, %s6, %s4
  $region1: #{convblock_forward.1} parent=0
    #allocation2 [shape = 'u8[32768]{0}', space=vmem, size = 0x8000, scoped, tag = 'output window, operand 0']
    #allocation3 [shape = 's32[2]{0}', space=sflag, size = 0x8, scoped, tag = 'scoped memory for convblock_forward.1']
    %8 = vsyncpa [#allocation3], 0
    %s9 = scalar_lea.sflag [#allocation3], 1
    %10 = vsyncpa %s9, 0
    loop: start=0, step=1, limit=4
    $region2: #{convblock_forward.1} parent=1 // loop_pre_header
      _
    $region3: #{convblock_forward.1} parent=1 // loop_header
      %s12 = sphi 0, %s16
      %p13 = scmp.ge.s32.totalorder %s12, 4
      %s22 = sphi 0, %s24
      %s25 = sphi 0, %s22
      %s26 = sphi 0, %s25
      %s42 = sphi 0, %s26
      %s46 = sphi 0, %s46
      %s48 = sphi 0, %s46
      %s49 = sphi 0, %s48
      %s63 = sphi 0, %s49
      %s67 = sphi 0, %s67
      %s69 = sphi 0, %s67
      %s70 = sphi 0, %s69
      %s84 = sphi 0, %s70
      %s90 = sphi 0, %s92
      %s93 = sphi 0, %s90
      %s94 = sphi 0, %s93
      %s110 = sphi 0, %s94
    $region4: #{convblock_forward.1} parent=1 // loop_header_branch
      %15 = sbr.rel (%p13) target = $region8
    $region5: #{convblock_forward.1} parent=1 // loop_body
      %s17 = ssub.s32 %s12, 1
      %s18 = ssub.s32 %s12, 2
      %s19 = sadd.s32 %s12, 1
      %s20 = ssub.s32 %s12, %s19
      %p21 = scmp.eq.s32.totalorder %s20, 0
      %s23 = sadd.s32 %s22, 1
      %s24 = scalar_select %p21, %s22, %s23
      %p27 = pneg %p21
      %p28 = scmp.eq.s32.totalorder %s12, 1
      %p29 = por %p27, %p28
      %p30 = scmp.ne.s32.totalorder %s22, %s25
      %p31 = scmp.eq.s32.totalorder %s12, 0
      %p32 = por %p30, %p31
      %p33 = scmp.ne.s32.totalorder %s22, %s25
      %p34 = scmp.eq.s32.totalorder %s17, 1
      %p35 = por %p33, %p34
      %p36 = scmp.ne.s32.totalorder %s25, %s26
      %p37 = scmp.eq.s32.totalorder %s17, 0
      %p38 = por %p36, %p37
      %p39 = scmp.ne.s32.totalorder %s25, %s26
      %p40 = scmp.eq.s32.totalorder %s18, 1
      %p41 = por %p39, %p40
      %p43 = scmp.ne.s32.totalorder %s26, %s42
      %p44 = scmp.eq.s32.totalorder %s18, 0
      %p45 = por %p43, %p44
      %s47 = sadd.s32 %s46, 1
      %p50 = scmp.eq.s32.totalorder %s12, 1
      %p51 = scmp.ne.s32.totalorder %s46, %s48
      %p52 = scmp.eq.s32.totalorder %s12, 0
      %p53 = por %p51, %p52
      %p54 = scmp.ne.s32.totalorder %s46, %s48
      %p55 = scmp.eq.s32.totalorder %s17, 1
      %p56 = por %p54, %p55
      %p57 = scmp.ne.s32.totalorder %s48, %s49
      %p58 = scmp.eq.s32.totalorder %s17, 0
      %p59 = por %p57, %p58
      %p60 = scmp.ne.s32.totalorder %s48, %s49
      %p61 = scmp.eq.s32.totalorder %s18, 1
      %p62 = por %p60, %p61
      %p64 = scmp.ne.s32.totalorder %s49, %s63
      %p65 = scmp.eq.s32.totalorder %s18, 0
      %p66 = por %p64, %p65
      %s68 = sadd.s32 %s67, 1
      %p71 = scmp.eq.s32.totalorder %s12, 1
      %p72 = scmp.ne.s32.totalorder %s67, %s69
      %p73 = scmp.eq.s32.totalorder %s12, 0
      %p74 = por %p72, %p73
      %p75 = scmp.ne.s32.totalorder %s67, %s69
      %p76 = scmp.eq.s32.totalorder %s17, 1
      %p77 = por %p75, %p76
      %p78 = scmp.ne.s32.totalorder %s69, %s70
      %p79 = scmp.eq.s32.totalorder %s17, 0
      %p80 = por %p78, %p79
      %p81 = scmp.ne.s32.totalorder %s69, %s70
      %p82 = scmp.eq.s32.totalorder %s18, 1
      %p83 = por %p81, %p82
      %p85 = scmp.ne.s32.totalorder %s70, %s84
      %p86 = scmp.eq.s32.totalorder %s18, 0
      %p87 = por %p85, %p86
      %s88 = ssub.s32 %s12, %s19
      %p89 = scmp.eq.s32.totalorder %s88, 0
      %s91 = sadd.s32 %s90, 1
      %s92 = scalar_select %p89, %s90, %s91
      %p95 = pneg %p89
      %p96 = scmp.eq.s32.totalorder %s12, 1
      %p97 = por %p95, %p96
      %p98 = scmp.ne.s32.totalorder %s90, %s93
      %p99 = scmp.eq.s32.totalorder %s12, 0
      %p100 = por %p98, %p99
      %p101 = scmp.ne.s32.totalorder %s90, %s93
      %p102 = scmp.eq.s32.totalorder %s17, 1
      %p103 = por %p101, %p102
      %p104 = scmp.ne.s32.totalorder %s93, %s94
      %p105 = scmp.eq.s32.totalorder %s17, 0
      %p106 = por %p104, %p105
      %p107 = scmp.ne.s32.totalorder %s93, %s94
      %p108 = scmp.eq.s32.totalorder %s18, 1
      %p109 = por %p107, %p108
      %p111 = scmp.ne.s32.totalorder %s94, %s110
      %p112 = scmp.eq.s32.totalorder %s18, 0
      %p113 = por %p111, %p112
      %p114 = scmp.le.s32.totalorder 1, %s12
      %p115 = scmp.lt.s32.totalorder %s12, 3
      %p116 = pnand %p114, %p115
      %p117 = pneg %p116
      // Predicated region
      $region9: #{convblock_forward.1} parent=5 // pred_check
        _
      $region10: #{convblock_forward.1} parent=5 // pred_check_branch
        %119 = sbr.rel (%p116) target = $region12
      $region11: #{convblock_forward.1} parent=5 // pred_region
        %s120 = ssub.s32 %s12, 1
        // Predicated region
        $region13: #{convblock_forward.1} parent=11 // pred_check
          %p121 = pneg %p59
        $region14: #{convblock_forward.1} parent=11 // pred_check_branch
          %123 = sbr.rel (%p121) target = $region16
        $region15: #{convblock_forward.1} parent=11 // pred_region
          _
        $region16: #{convblock_forward.1} parent=11 // pred_fallthru
          _
        // Predicated region
        $region17: #{convblock_forward.1} parent=11 // pred_check
          %p124 = pneg %p80
        $region18: #{convblock_forward.1} parent=11 // pred_check_branch
          %126 = sbr.rel (%p124) target = $region20
        $region19: #{convblock_forward.1} parent=11 // pred_region
          _
        $region20: #{convblock_forward.1} parent=11 // pred_fallthru
          _
      $region12: #{convblock_forward.1} parent=5 // pred_fallthru
        _
      %p127 = scmp.lt.s32.totalorder %s12, 2
      // Predicated region
      $region21: #{convblock_forward.1} parent=5 // pred_check
        %p128 = pneg %p127
      $region22: #{convblock_forward.1} parent=5 // pred_check_branch
        %130 = sbr.rel (%p128) target = $region24
      $region23: #{convblock_forward.1} parent=5 // pred_region
        // Predicated region
        $region25: #{convblock_forward.1} parent=23 // pred_check
          %p131 = pneg %p32
        $region26: #{convblock_forward.1} parent=23 // pred_check_branch
          %133 = sbr.rel (%p131) target = $region28
        $region27: #{convblock_forward.1} parent=23 // pred_region
          %p134 = scmp.lt.s32.totalorder %s12, 1
          %s135 = scalar_select %p134, %s12, 1
          %s136 = smul.addr %s135, 18
          %s137 = smul.addr %s136, 4
          %s138 = scalar_lea.vmem %s0, %s137
        $region28: #{convblock_forward.1} parent=23 // pred_fallthru
          _
      $region24: #{convblock_forward.1} parent=5 // pred_fallthru
        _
      %p139 = scmp.le.s32.totalorder 1, %s12
      %p140 = scmp.lt.s32.totalorder %s12, 3
      %p141 = pnand %p139, %p140
      %p142 = pneg %p141
      // Predicated region
      $region29: #{convblock_forward.1} parent=5 // pred_check
        _
      $region30: #{convblock_forward.1} parent=5 // pred_check_branch
        %144 = sbr.rel (%p141) target = $region32
      $region31: #{convblock_forward.1} parent=5 // pred_region
        %s145 = ssub.s32 %s12, 1
        %p146 = scmp.lt.s32.totalorder %s17, 1
        %s147 = scalar_select %p146, %s17, 1
        %s148 = smul.addr %s147, 18
        %s149 = smul.addr %s148, 4
        %s150 = scalar_lea.vmem %s0, %s149
        %p151 = pneg %p38
        %p152 = pneg %p35
        %p153 = pneg %p59
        %p154 = pneg %p56
        %p155 = pneg %p80
        %p156 = pneg %p77
        %p157 = pneg %p106
        %p158 = pneg %p103
        %s159 = sand.u32 %s93, 1
        %s160 = scalar_lea.sflag [#allocation3], %s159
        %s161 = sand.u32 %s93, 1
        %s162 = smul.addr %s161, 32
        %s163 = scalar_lea.vmem [#allocation2], %s162
        %p164 = scmp.lt.s32.totalorder %s17, 1
        %s165 = scalar_select %p164, %s17, 1
        %s166 = smul.addr %s165, 18
        %s167 = smul.addr %s166, 4
        %s168 = scalar_lea.vmem %s0, %s167
        %v170 = vld [vmem:[%s168] sm:$0xf]
        %v171 = vld [vmem:[%s168 + $0x4] sm:$0x1]
        %v172 = vld [vmem:[%s168 + $0x8] sm:$0xf]
        %v173 = vld [vmem:[%s168 + $0xc] sm:$0x1]
        %v174 = vld [vmem:[%s168 + $0x10] sm:$0xf]
        %v175 = vld [vmem:[%s168 + $0x14] sm:$0x1]
        %v176 = vld [vmem:[%s168 + $0x18] sm:$0xf]
        %v177 = vld [vmem:[%s168 + $0x1c] sm:$0x1]
        %v178 = vld [vmem:[%s168 + $0x20] sm:$0xf]
        %v179 = vld [vmem:[%s168 + $0x24] sm:$0x1]
        %v180 = vld [vmem:[%s168 + $0x28] sm:$0xf]
        %v181 = vld [vmem:[%s168 + $0x2c] sm:$0x1]
        %v182 = vld [vmem:[%s168 + $0x30] sm:$0xf]
        %v183 = vld [vmem:[%s168 + $0x34] sm:$0x1]
        %v184 = vld [vmem:[%s168 + $0x38] sm:$0xf]
        %v185 = vld [vmem:[%s168 + $0x3c] sm:$0x1]
        %v186 = vld [vmem:[%s168 + $0x40] sm:$0xf]
        %v187 = vld [vmem:[%s168 + $0x44] sm:$0x1]
        %v188 = vld [vmem:[%s1] sm:$0xf]
        %v189 = vld [vmem:[%s1 + $0x4] sm:$0xf]
        %v190 = vld [vmem:[%s1 + $0x8] sm:$0xf]
        %v191 = vld [vmem:[%s1 + $0xc] sm:$0xf]
        %vm192 = vsmask.f32 3328
        %vm193 = vsmask.f32 7440
        %vm194 = vmor %vm192, %vm193
        %v196 = vshrl.u32 %v170, 16
        %v198 = vrot.slane %v196, 4
        %v199 = vshll.u32 %v170, 16
        %v201 = vrot.slane %v199, 5
        %v202 = vor.u32 %v198, %v201
        %v203 = vrot.slane %v202, 4
        %v205 = vshll.u32 %v171, 16
        %v207 = vrot.slane %v205, 5
        %v208 = vsel %vm194, %v203, %v207
        %v210 = vshrl.u32 %v172, 16
        %v212 = vrot.slane %v210, 4
        %v213 = vshll.u32 %v172, 16
        %v215 = vrot.slane %v213, 5
        %v216 = vor.u32 %v212, %v215
        %v217 = vrot.slane %v216, 4
        %v219 = vshll.u32 %v173, 16
        %v221 = vrot.slane %v219, 5
        %v222 = vsel %vm194, %v217, %v221
        %v224 = vshrl.u32 %v174, 16
        %v226 = vrot.slane %v224, 4
        %v227 = vshll.u32 %v174, 16
        %v229 = vrot.slane %v227, 5
        %v230 = vor.u32 %v226, %v229
        %v231 = vrot.slane %v230, 4
        %v233 = vshll.u32 %v175, 16
        %v235 = vrot.slane %v233, 5
        %v236 = vsel %vm194, %v231, %v235
        %v238 = vshrl.u32 %v176, 16
        %v240 = vrot.slane %v238, 4
        %v241 = vshll.u32 %v176, 16
        %v243 = vrot.slane %v241, 5
        %v244 = vor.u32 %v240, %v243
        %v245 = vrot.slane %v244, 4
        %v247 = vshll.u32 %v177, 16
        %v249 = vrot.slane %v247, 5
        %v250 = vsel %vm194, %v245, %v249
        %v252 = vshrl.u32 %v178, 16
        %v254 = vrot.slane %v252, 4
        %v255 = vshll.u32 %v178, 16
        %v257 = vrot.slane %v255, 5
        %v258 = vor.u32 %v254, %v257
        %v259 = vrot.slane %v258, 4
        %v261 = vshll.u32 %v179, 16
        %v263 = vrot.slane %v261, 5
        %v264 = vsel %vm194, %v259, %v263
        %v266 = vshrl.u32 %v180, 16
        %v268 = vrot.slane %v266, 4
        %v269 = vshll.u32 %v180, 16
        %v271 = vrot.slane %v269, 5
        %v272 = vor.u32 %v268, %v271
        %v273 = vrot.slane %v272, 4
        %v275 = vshll.u32 %v181, 16
        %v277 = vrot.slane %v275, 5
        %v278 = vsel %vm194, %v273, %v277
        %v280 = vshrl.u32 %v182, 16
        %v282 = vrot.slane %v280, 4
        %v283 = vshll.u32 %v182, 16
        %v285 = vrot.slane %v283, 5
        %v286 = vor.u32 %v282, %v285
        %v287 = vrot.slane %v286, 4
        %v289 = vshll.u32 %v183, 16
        %v291 = vrot.slane %v289, 5
        %v292 = vsel %vm194, %v287, %v291
        %v294 = vshrl.u32 %v184, 16
        %v296 = vrot.slane %v294, 4
        %v297 = vshll.u32 %v184, 16
        %v299 = vrot.slane %v297, 5
        %v300 = vor.u32 %v296, %v299
        %v301 = vrot.slane %v300, 4
        %v303 = vshll.u32 %v185, 16
        %v305 = vrot.slane %v303, 5
        %v306 = vsel %vm194, %v301, %v305
        %s307 = scalar_lea.vmem %s1, 16
        %v308 = vld [vmem:[%s307] sm:$0xf]
        %v309 = vld [vmem:[%s307 + $0x4] sm:$0xf]
        %v310 = vld [vmem:[%s307 + $0x8] sm:$0xf]
        %v311 = vld [vmem:[%s307 + $0xc] sm:$0xf]
        %v312 = vunpack.c.l.b16 %v208
        %v313 = vunpack.c.l.b16 %v222
        %v314 = vunpack.c.l.b16 %v236
        %v315 = vunpack.c.l.b16 %v250
        %v316 = vunpack.c.l.b16 %v264
        %v317 = vunpack.c.l.b16 %v278
        %v318 = vunpack.c.l.b16 %v292
        %v319 = vunpack.c.l.b16 %v306
        %v320 = vpack.c.b16 %v313, %v312
        %v321 = vpack.c.b16 %v315, %v314
        %v322 = vpack.c.b16 %v317, %v316
        %v323 = vpack.c.b16 %v319, %v318
        %v328 = vunpack.c.l.b16 %v308
        %v329 = vunpack.c.l.b16 %v309
        %v330 = vunpack.c.l.b16 %v310
        %v331 = vunpack.c.l.b16 %v311
        %v332 = vpack.c.b16 %v329, %v328
        %v333 = vpack.c.b16 %v331, %v330
        %vm336 = vcmask 261120
        %v338 = vsel %vm336, %v320, 0
        %v341 = vsel %vm336, %v321, 0
        %v344 = vsel %vm336, %v322, 0
        %v347 = vsel %vm336, %v323, 0
        %349 = vmatprep.subr.bf16.mxu0 0
        %350 = vmatpush1.bf16.msra.mxu0 0
        %351 = vmatprep.subr.bf16.mxu0 0
        %352 = vmatpush1.bf16.msra.mxu0 0
        %353 = vmatprep.subr.bf16.mxu0 0
        %354 = vmatpush1.bf16.msra.mxu0 0
        %355 = vmatprep.subr.bf16.mxu0 0
        %356 = vmatpush1.bf16.msra.mxu0 0
        %357 = vmatprep.subr.bf16.mxu0 0
        %358 = vmatpush1.bf16.msra.mxu0 0
        %359 = vmatprep.subr.bf16.mxu0 0
        %360 = vmatpush1.bf16.msra.mxu0 0
        %361 = vmatprep.subr.bf16.mxu0 0
        %362 = vmatpush1.bf16.msra.mxu0 %v333
        %363 = vmatprep.subr.bf16.mxu0 0
        %364 = vmatpush1.bf16.msra.mxu0 %v332
        %365 = vmatprep.subr.bf16.mxu0 0
        %366 = vmatpush2.bf16.msra.mxu0 0
        %367 = vmatprep.subr.bf16.mxu0 0
        %368 = vmatpush2.bf16.msra.mxu0 0
        %369 = vmatprep.subr.bf16.mxu0 0
        %370 = vmatpush2.bf16.msra.mxu0 0
        %371 = vmatprep.subr.bf16.mxu0 0
        %372 = vmatpush2.bf16.msra.mxu0 0
        %373 = vmatprep.subr.bf16.mxu0 0
        %374 = vmatpush2.bf16.msra.mxu0 0
        %375 = vmatprep.subr.bf16.mxu0 0
        %376 = vmatpush2.bf16.msra.mxu0 0
        %377 = vmatprep.subr.bf16.mxu0 0
        %378 = vmatpush2.bf16.msra.mxu0 0
        %379 = vmatprep.subr.bf16.mxu0 0
        %380 = vmatpush2.bf16.msra.mxu0 0
        %381 = vmatprep.mubr.bf16.mxu0 0
        %382 = vmatmul.mubr.bf16.gmra.mxu0 %v338
        %v383 = vpop.f32.mrf.mxu0
        %v384 = vadd.f32 0.0, %v383
        %v385 = vpop.f32.mrf.mxu0
        %v386 = vpop.f32.mrf.mxu0
        %v387 = vadd.f32 0.0, %v386
        %v388 = vpop.f32.mrf.mxu0
        %389 = vmatprep.mubr.bf16.mxu0 0
        %390 = vmatmul.mubr.bf16.gmra.mxu0 %v341
        %v391 = vpop.f32.mrf.mxu0
        %v392 = vadd.f32 0.0, %v391
        %v393 = vpop.f32.mrf.mxu0
        %v394 = vpop.f32.mrf.mxu0
        %v395 = vadd.f32 0.0, %v394
        %v396 = vpop.f32.mrf.mxu0
        %397 = vmatprep.mubr.bf16.mxu0 0
        %398 = vmatmul.mubr.bf16.gmra.mxu0 %v344
        %v399 = vpop.f32.mrf.mxu0
        %v400 = vadd.f32 0.0, %v399
        %v401 = vpop.f32.mrf.mxu0
        %v402 = vpop.f32.mrf.mxu0
        %v403 = vadd.f32 0.0, %v402
        %v404 = vpop.f32.mrf.mxu0
        %405 = vmatprep.mubr.bf16.mxu0 0
        %406 = vmatmul.mubr.bf16.gmra.mxu0 %v347
        %v407 = vpop.f32.mrf.mxu0
        %v408 = vadd.f32 0.0, %v407
        %v409 = vpop.f32.mrf.mxu0
        %v410 = vpop.f32.mrf.mxu0
        %v411 = vadd.f32 0.0, %v410
        %v412 = vpop.f32.mrf.mxu0
        %413 = vdwg.mxu0
        %v422 = vunpack.c.l.b16 %v170
        %v423 = vunpack.c.l.b16 %v172
        %v424 = vunpack.c.l.b16 %v174
        %v425 = vunpack.c.l.b16 %v176
        %v426 = vunpack.c.l.b16 %v178
        %v427 = vunpack.c.l.b16 %v180
        %v428 = vunpack.c.l.b16 %v182
        %v429 = vunpack.c.l.b16 %v184
        %v430 = vpack.c.b16 %v423, %v422
        %v431 = vpack.c.b16 %v425, %v424
        %v432 = vpack.c.b16 %v427, %v426
        %v433 = vpack.c.b16 %v429, %v428
        %v438 = vunpack.c.l.b16 %v188
        %v439 = vunpack.c.l.b16 %v189
        %v440 = vunpack.c.l.b16 %v190
        %v441 = vunpack.c.l.b16 %v191
        %v442 = vpack.c.b16 %v439, %v438
        %v443 = vpack.c.b16 %v441, %v440
        %v447 = vsel %vm336, %v430, 0
        %v450 = vsel %vm336, %v431, 0
        %v453 = vsel %vm336, %v432, 0
        %v456 = vsel %vm336, %v433, 0
        %458 = vmatprep.subr.bf16.mxu0 0
        %459 = vmatpush1.bf16.msra.mxu0 0
        %460 = vmatprep.subr.bf16.mxu0 0
        %461 = vmatpush1.bf16.msra.mxu0 0
        %462 = vmatprep.subr.bf16.mxu0 0
        %463 = vmatpush1.bf16.msra.mxu0 0
        %464 = vmatprep.subr.bf16.mxu0 0
        %465 = vmatpush1.bf16.msra.mxu0 0
        %466 = vmatprep.subr.bf16.mxu0 0
        %467 = vmatpush1.bf16.msra.mxu0 0
        %468 = vmatprep.subr.bf16.mxu0 0
        %469 = vmatpush1.bf16.msra.mxu0 0
        %470 = vmatprep.subr.bf16.mxu0 0
        %471 = vmatpush1.bf16.msra.mxu0 %v443
        %472 = vmatprep.subr.bf16.mxu0 0
        %473 = vmatpush1.bf16.msra.mxu0 %v442
        %474 = vmatprep.subr.bf16.mxu0 0
        %475 = vmatpush2.bf16.msra.mxu0 0
        %476 = vmatprep.subr.bf16.mxu0 0
        %477 = vmatpush2.bf16.msra.mxu0 0
        %478 = vmatprep.subr.bf16.mxu0 0
        %479 = vmatpush2.bf16.msra.mxu0 0
        %480 = vmatprep.subr.bf16.mxu0 0
        %481 = vmatpush2.bf16.msra.mxu0 0
        %482 = vmatprep.subr.bf16.mxu0 0
        %483 = vmatpush2.bf16.msra.mxu0 0
        %484 = vmatprep.subr.bf16.mxu0 0
        %485 = vmatpush2.bf16.msra.mxu0 0
        %486 = vmatprep.subr.bf16.mxu0 0
        %487 = vmatpush2.bf16.msra.mxu0 0
        %488 = vmatprep.subr.bf16.mxu0 0
        %489 = vmatpush2.bf16.msra.mxu0 0
        %490 = vmatprep.mubr.bf16.mxu0 0
        %491 = vmatmul.mubr.bf16.gmra.mxu0 %v447
        %v492 = vpop.f32.mrf.mxu0
        %v493 = vadd.f32 %v384, %v492
        %v494 = vpop.f32.mrf.mxu0
        %v495 = vpop.f32.mrf.mxu0
        %v496 = vadd.f32 %v387, %v495
        %v497 = vpop.f32.mrf.mxu0
        %498 = vmatprep.mubr.bf16.mxu0 0
        %499 = vmatmul.mubr.bf16.gmra.mxu0 %v450
        %v500 = vpop.f32.mrf.mxu0
        %v501 = vadd.f32 %v392, %v500
        %v502 = vpop.f32.mrf.mxu0
        %v503 = vpop.f32.mrf.mxu0
        %v504 = vadd.f32 %v395, %v503
        %v505 = vpop.f32.mrf.mxu0
        %506 = vmatprep.mubr.bf16.mxu0 0
        %507 = vmatmul.mubr.bf16.gmra.mxu0 %v453
        %v508 = vpop.f32.mrf.mxu0
        %v509 = vadd.f32 %v400, %v508
        %v510 = vpop.f32.mrf.mxu0
        %v511 = vpop.f32.mrf.mxu0
        %v512 = vadd.f32 %v403, %v511
        %v513 = vpop.f32.mrf.mxu0
        %514 = vmatprep.mubr.bf16.mxu0 0
        %515 = vmatmul.mubr.bf16.gmra.mxu0 %v456
        %v516 = vpop.f32.mrf.mxu0
        %v517 = vadd.f32 %v408, %v516
        %v518 = vpop.f32.mrf.mxu0
        %v519 = vpop.f32.mrf.mxu0
        %v520 = vadd.f32 %v411, %v519
        %v521 = vpop.f32.mrf.mxu0
        %522 = vdwg.mxu0
        %s523 = scalar_lea.vmem %s1, 32
        %v524 = vld [vmem:[%s523] sm:$0xf]
        %v525 = vld [vmem:[%s523 + $0x4] sm:$0xf]
        %v526 = vld [vmem:[%s523 + $0x8] sm:$0xf]
        %v527 = vld [vmem:[%s523 + $0xc] sm:$0xf]
        %v529 = vunpack.c.l.b16 %v186
        %v530 = vpack.c.b16 %v424, %v423
        %v531 = vpack.c.b16 %v426, %v425
        %v532 = vpack.c.b16 %v428, %v427
        %v533 = vpack.c.b16 %v529, %v429
        %v538 = vunpack.c.l.b16 %v524
        %v539 = vunpack.c.l.b16 %v525
        %v540 = vunpack.c.l.b16 %v526
        %v541 = vunpack.c.l.b16 %v527
        %v542 = vpack.c.b16 %v539, %v538
        %v543 = vpack.c.b16 %v541, %v540
        %v547 = vsel %vm336, %v530, 0
        %v550 = vsel %vm336, %v531, 0
        %v553 = vsel %vm336, %v532, 0
        %v556 = vsel %vm336, %v533, 0
        %558 = vmatprep.subr.bf16.mxu0 0
        %559 = vmatpush1.bf16.msra.mxu0 0
        %560 = vmatprep.subr.bf16.mxu0 0
        %561 = vmatpush1.bf16.msra.mxu0 0
        %562 = vmatprep.subr.bf16.mxu0 0
        %563 = vmatpush1.bf16.msra.mxu0 0
        %564 = vmatprep.subr.bf16.mxu0 0
        %565 = vmatpush1.bf16.msra.mxu0 0
        %566 = vmatprep.subr.bf16.mxu0 0
        %567 = vmatpush1.bf16.msra.mxu0 0
        %568 = vmatprep.subr.bf16.mxu0 0
        %569 = vmatpush1.bf16.msra.mxu0 0
        %570 = vmatprep.subr.bf16.mxu0 0
        %571 = vmatpush1.bf16.msra.mxu0 %v543
        %572 = vmatprep.subr.bf16.mxu0 0
        %573 = vmatpush1.bf16.msra.mxu0 %v542
        %574 = vmatprep.subr.bf16.mxu0 0
        %575 = vmatpush2.bf16.msra.mxu0 0
        %576 = vmatprep.subr.bf16.mxu0 0
        %577 = vmatpush2.bf16.msra.mxu0 0
        %578 = vmatprep.subr.bf16.mxu0 0
        %579 = vmatpush2.bf16.msra.mxu0 0
        %580 = vmatprep.subr.bf16.mxu0 0
        %581 = vmatpush2.bf16.msra.mxu0 0
        %582 = vmatprep.subr.bf16.mxu0 0
        %583 = vmatpush2.bf16.msra.mxu0 0
        %584 = vmatprep.subr.bf16.mxu0 0
        %585 = vmatpush2.bf16.msra.mxu0 0
        %586 = vmatprep.subr.bf16.mxu0 0
        %587 = vmatpush2.bf16.msra.mxu0 0
        %588 = vmatprep.subr.bf16.mxu0 0
        %589 = vmatpush2.bf16.msra.mxu0 0
        %590 = vmatprep.mubr.bf16.mxu0 0
        %591 = vmatmul.mubr.bf16.gmra.mxu0 %v547
        %v592 = vpop.f32.mrf.mxu0
        %v593 = vadd.f32 0.0, %v592
        %v594 = vpop.f32.mrf.mxu0
        %v595 = vpop.f32.mrf.mxu0
        %v596 = vadd.f32 0.0, %v595
        %v597 = vpop.f32.mrf.mxu0
        %598 = vmatprep.mubr.bf16.mxu0 0
        %599 = vmatmul.mubr.bf16.gmra.mxu0 %v550
        %v600 = vpop.f32.mrf.mxu0
        %v601 = vadd.f32 0.0, %v600
        %v602 = vpop.f32.mrf.mxu0
        %v603 = vpop.f32.mrf.mxu0
        %v604 = vadd.f32 0.0, %v603
        %v605 = vpop.f32.mrf.mxu0
        %606 = vmatprep.mubr.bf16.mxu0 0
        %607 = vmatmul.mubr.bf16.gmra.mxu0 %v553
        %v608 = vpop.f32.mrf.mxu0
        %v609 = vadd.f32 0.0, %v608
        %v610 = vpop.f32.mrf.mxu0
        %v611 = vpop.f32.mrf.mxu0
        %v612 = vadd.f32 0.0, %v611
        %v613 = vpop.f32.mrf.mxu0
        %614 = vmatprep.mubr.bf16.mxu0 0
        %615 = vmatmul.mubr.bf16.gmra.mxu0 %v556
        %v616 = vpop.f32.mrf.mxu0
        %v617 = vadd.f32 0.0, %v616
        %v618 = vpop.f32.mrf.mxu0
        %v619 = vpop.f32.mrf.mxu0
        %v620 = vadd.f32 0.0, %v619
        %v621 = vpop.f32.mrf.mxu0
        %622 = vdwg.mxu0
        %v623 = vadd.f32 %v493, %v593
        %v624 = vadd.f32 %v496, %v596
        %v625 = vadd.f32 %v501, %v601
        %v626 = vadd.f32 %v504, %v604
        %v627 = vadd.f32 %v509, %v609
        %v628 = vadd.f32 %v512, %v612
        %v629 = vadd.f32 %v517, %v617
        %v630 = vadd.f32 %v520, %v620
        %v632 = vshrl.u32 %v186, 16
        %v634 = vrot.slane %v632, 4
        %v635 = vshll.u32 %v186, 16
        %v637 = vrot.slane %v635, 5
        %v638 = vor.u32 %v634, %v637
        %v639 = vrot.slane %v638, 4
        %v641 = vshll.u32 %v187, 16
        %v643 = vrot.slane %v641, 5
        %v644 = vsel %vm194, %v639, %v643
        %s645 = scalar_lea.vmem %s1, 48
        %v646 = vld [vmem:[%s645] sm:$0xf]
        %v647 = vld [vmem:[%s645 + $0x4] sm:$0xf]
        %v648 = vld [vmem:[%s645 + $0x8] sm:$0xf]
        %v649 = vld [vmem:[%s645 + $0xc] sm:$0xf]
        %v650 = vunpack.c.l.b16 %v644
        %v651 = vpack.c.b16 %v314, %v313
        %v652 = vpack.c.b16 %v316, %v315
        %v653 = vpack.c.b16 %v318, %v317
        %v654 = vpack.c.b16 %v650, %v319
        %v659 = vunpack.c.l.b16 %v646
        %v660 = vunpack.c.l.b16 %v647
        %v661 = vunpack.c.l.b16 %v648
        %v662 = vunpack.c.l.b16 %v649
        %v663 = vpack.c.b16 %v660, %v659
        %v664 = vpack.c.b16 %v662, %v661
        %v668 = vsel %vm336, %v651, 0
        %v671 = vsel %vm336, %v652, 0
        %v674 = vsel %vm336, %v653, 0
        %v677 = vsel %vm336, %v654, 0
        %679 = vmatprep.subr.bf16.mxu0 0
        %680 = vmatpush1.bf16.msra.mxu0 0
        %681 = vmatprep.subr.bf16.mxu0 0
        %682 = vmatpush1.bf16.msra.mxu0 0
        %683 = vmatprep.subr.bf16.mxu0 0
        %684 = vmatpush1.bf16.msra.mxu0 0
        %685 = vmatprep.subr.bf16.mxu0 0
        %686 = vmatpush1.bf16.msra.mxu0 0
        %687 = vmatprep.subr.bf16.mxu0 0
        %688 = vmatpush1.bf16.msra.mxu0 0
        %689 = vmatprep.subr.bf16.mxu0 0
        %690 = vmatpush1.bf16.msra.mxu0 0
        %691 = vmatprep.subr.bf16.mxu0 0
        %692 = vmatpush1.bf16.msra.mxu0 %v664
        %693 = vmatprep.subr.bf16.mxu0 0
        %694 = vmatpush1.bf16.msra.mxu0 %v663
        %695 = vmatprep.subr.bf16.mxu0 0
        %696 = vmatpush2.bf16.msra.mxu0 0
        %697 = vmatprep.subr.bf16.mxu0 0
        %698 = vmatpush2.bf16.msra.mxu0 0
        %699 = vmatprep.subr.bf16.mxu0 0
        %700 = vmatpush2.bf16.msra.mxu0 0
        %701 = vmatprep.subr.bf16.mxu0 0
        %702 = vmatpush2.bf16.msra.mxu0 0
        %703 = vmatprep.subr.bf16.mxu0 0
        %704 = vmatpush2.bf16.msra.mxu0 0
        %705 = vmatprep.subr.bf16.mxu0 0
        %706 = vmatpush2.bf16.msra.mxu0 0
        %707 = vmatprep.subr.bf16.mxu0 0
        %708 = vmatpush2.bf16.msra.mxu0 0
        %709 = vmatprep.subr.bf16.mxu0 0
        %710 = vmatpush2.bf16.msra.mxu0 0
        %711 = vmatprep.mubr.bf16.mxu0 0
        %712 = vmatmul.mubr.bf16.gmra.mxu0 %v668
        %v713 = vpop.f32.mrf.mxu0
        %v714 = vadd.f32 0.0, %v713
        %v715 = vpop.f32.mrf.mxu0
        %v716 = vpop.f32.mrf.mxu0
        %v717 = vadd.f32 0.0, %v716
        %v718 = vpop.f32.mrf.mxu0
        %719 = vmatprep.mubr.bf16.mxu0 0
        %720 = vmatmul.mubr.bf16.gmra.mxu0 %v671
        %v721 = vpop.f32.mrf.mxu0
        %v722 = vadd.f32 0.0, %v721
        %v723 = vpop.f32.mrf.mxu0
        %v724 = vpop.f32.mrf.mxu0
        %v725 = vadd.f32 0.0, %v724
        %v726 = vpop.f32.mrf.mxu0
        %727 = vmatprep.mubr.bf16.mxu0 0
        %728 = vmatmul.mubr.bf16.gmra.mxu0 %v674
        %v729 = vpop.f32.mrf.mxu0
        %v730 = vadd.f32 0.0, %v729
        %v731 = vpop.f32.mrf.mxu0
        %v732 = vpop.f32.mrf.mxu0
        %v733 = vadd.f32 0.0, %v732
        %v734 = vpop.f32.mrf.mxu0
        %735 = vmatprep.mubr.bf16.mxu0 0
        %736 = vmatmul.mubr.bf16.gmra.mxu0 %v677
        %v737 = vpop.f32.mrf.mxu0
        %v738 = vadd.f32 0.0, %v737
        %v739 = vpop.f32.mrf.mxu0
        %v740 = vpop.f32.mrf.mxu0
        %v741 = vadd.f32 0.0, %v740
        %v742 = vpop.f32.mrf.mxu0
        %743 = vdwg.mxu0
        %v744 = vadd.f32 %v623, %v714
        %v745 = vadd.f32 %v624, %v717
        %v746 = vadd.f32 %v625, %v722
        %v747 = vadd.f32 %v626, %v725
        %v748 = vadd.f32 %v627, %v730
        %v749 = vadd.f32 %v628, %v733
        %v750 = vadd.f32 %v629, %v738
        %v751 = vadd.f32 %v630, %v741
        %v752 = vld [vmem:[%s2] sm:$0x1]
        %v754 = vlaneseq
        %v755 = vshrl.u32 %v754, 7
        %v756 = vsub.s32 0, %v755
        %v757 = vrot.slane %v752, %v756
        %v759 = vadd.f32 %v744, %v757
        %v760 = vadd.f32 %v745, %v757
        %v761 = vadd.f32 %v746, %v757
        %v762 = vadd.f32 %v747, %v757
        %v763 = vadd.f32 %v748, %v757
        %v764 = vadd.f32 %v749, %v757
        %v765 = vadd.f32 %v750, %v757
        %v766 = vadd.f32 %v751, %v757
        %v767 = vmul.f32 %v759, 0.2
        %v768 = vmul.f32 %v760, 0.2
        %v769 = vmul.f32 %v761, 0.2
        %v770 = vmul.f32 %v762, 0.2
        %v771 = vmul.f32 %v763, 0.2
        %v772 = vmul.f32 %v764, 0.2
        %v773 = vmul.f32 %v765, 0.2
        %v774 = vmul.f32 %v766, 0.2
        %v775 = vmax.f32 %v759, %v767
        %v776 = vmax.f32 %v760, %v768
        %v777 = vmax.f32 %v761, %v769
        %v778 = vmax.f32 %v762, %v770
        %v779 = vmax.f32 %v763, %v771
        %v780 = vmax.f32 %v764, %v772
        %v781 = vmax.f32 %v765, %v773
        %v782 = vmax.f32 %v766, %v774
        %v783 = vpack.c.bf16 %v775, %v775
        %v784 = vpack.c.bf16 %v776, %v776
        %v785 = vpack.c.bf16 %v777, %v777
        %v786 = vpack.c.bf16 %v778, %v778
        %v787 = vpack.c.bf16 %v779, %v779
        %v788 = vpack.c.bf16 %v780, %v780
        %v789 = vpack.c.bf16 %v781, %v781
        %v790 = vpack.c.bf16 %v782, %v782
        %791 = vst [vmem:[%s163] sm:$0xf] %v783
        %792 = vst [vmem:[%s163 + $0x4] sm:$0xf] %v784
        %793 = vst [vmem:[%s163 + $0x8] sm:$0xf] %v785
        %794 = vst [vmem:[%s163 + $0xc] sm:$0xf] %v786
        %795 = vst [vmem:[%s163 + $0x10] sm:$0xf] %v787
        %796 = vst [vmem:[%s163 + $0x14] sm:$0xf] %v788
        %797 = vst [vmem:[%s163 + $0x18] sm:$0xf] %v789
        %798 = vst [vmem:[%s163 + $0x1c] sm:$0xf] %v790
        %s799 = sand.u32 %s93, 1
        %s800 = scalar_lea.sflag [#allocation3], %s799
        %s801 = sand.u32 %s93, 1
        %s802 = smul.addr %s801, 32
        %s803 = scalar_lea.vmem [#allocation2], %s802
        // Predicated region
        $region33: #{convblock_forward.1} parent=31 // pred_check
          %p804 = pneg %p103
        $region34: #{convblock_forward.1} parent=31 // pred_check_branch
          %806 = sbr.rel (%p804) target = $region36
        $region35: #{convblock_forward.1} parent=31 // pred_region
          %s808 = ssub.s32 512, 512
          %809 = vsyncadd %s800, %s808
          %s810 = smul.addr %s17, 8
          %s811 = smul.addr %s810, 64
          %s812 = scalar_lea.hbm %s3, %s811
          %s813 = sshll.u32 %s803, 4
          %s814 = int_to_ptr.vmem [resolvable:$true] %s813
          %819 = dma.vmem_to_hbm [thread:$0]  %s814, 512, %s812, %s800, 64, 64, 4
        $region36: #{convblock_forward.1} parent=31 // pred_fallthru
          _
      $region32: #{convblock_forward.1} parent=5 // pred_fallthru
        _
      %p820 = scmp.le.s32.totalorder 2, %s12
      // Predicated region
      $region37: #{convblock_forward.1} parent=5 // pred_check
        %p821 = pneg %p820
      $region38: #{convblock_forward.1} parent=5 // pred_check_branch
        %823 = sbr.rel (%p821) target = $region40
      $region39: #{convblock_forward.1} parent=5 // pred_region
        %s824 = ssub.s32 %s12, 2
        // Predicated region
        $region41: #{convblock_forward.1} parent=39 // pred_check
          %p825 = pneg %p109
        $region42: #{convblock_forward.1} parent=39 // pred_check_branch
          %827 = sbr.rel (%p825) target = $region44
        $region43: #{convblock_forward.1} parent=39 // pred_region
          %s828 = sand.u32 %s94, 1
          %s829 = scalar_lea.sflag [#allocation3], %s828
          %s830 = sand.u32 %s94, 1
          %s831 = smul.addr %s830, 32
          %s832 = scalar_lea.vmem [#allocation2], %s831
          %833 = dma.done %s829, 512
        $region44: #{convblock_forward.1} parent=39 // pred_fallthru
          _
      $region40: #{convblock_forward.1} parent=5 // pred_fallthru
        _
    $region6: #{convblock_forward.1} parent=1 // loop_footer
      %s16 = sadd.s32 1, %s12
    $region7: #{convblock_forward.1} parent=1 // loop_footer_branch
      %11 = sbr.rel target = $region3
    $region8: #{convblock_forward.1} parent=1 // loop_exit
      _
    %834 = vsyncpa [#allocation3], 1
    %s835 = scalar_lea.sflag [#allocation3], 1
    %836 = vsyncpa %s835, 1

</llo_original>
